<compile_context>
chip_gen: v7x
topology: tpu7x:2x2x1
jax: 0.10.0
libtpu: 0.0.40
codegen_flags: <defaults>
</compile_context>

<pallas_src>
import jax
import jax.numpy as jnp
from jax.experimental import pallas as pl
from jax.experimental.pallas import tpu as pltpu

# Problem sizes implied by the module (N0/N1/N2 are module-level constants in bay.py).
N0, N1, N2 = 32, 64, 16
BATCH = 8

LANE = 128                                              # TPU lane width
N2_PAD = max(LANE, ((N2 + LANE - 1) // LANE) * LANE)    # lane-dense fc2 output width


def bayesian_nn_kernel(x_ref, s1_ref, s2_ref, o_ref):
    """One batch tile.

    s1_ref: [N0+1, N1]     sampled fc1 params, weight rows 0..N0-1 ([in, out] layout),
                           bias = last row. dtype = compute dtype (bf16 or f32).
    s2_ref: [N1+1, N2_PAD] sampled fc2 params, lane-padded to 128 output columns.
    """
    wdt = s1_ref.dtype
    x = x_ref[...].astype(wdt)                                     # [TB, N0]

    # fc1 + ReLU (weights already [in, out]; no in-kernel transpose; f32 accumulation)
    h = jnp.dot(x, s1_ref[:-1, :], preferred_element_type=jnp.float32)
    h = h + s1_ref[-1:, :].astype(jnp.float32)
    h = jnp.maximum(h, 0.0)

    # fc2 + Sigmoid via tanh: one exact EUP transcendental, lane-dense [TB, 128] store.
    z = jnp.dot(h.astype(wdt), s2_ref[:-1, :], preferred_element_type=jnp.float32)
    z = z + s2_ref[-1:, :].astype(jnp.float32)
    o_ref[...] = 0.5 + 0.5 * jnp.tanh(0.5 * z)


def _round_up(v, m):
    return ((v + m - 1) // m) * m


def bayesian_nn_forward(x, params, use_bf16=True):
    """x: [B, N0] float32. params: dict of PyTorch-layout parameter + eps arrays."""
    B = x.shape[0]
    dot_dtype = jnp.bfloat16 if use_bf16 else jnp.float32

    # --- One-off reparameterized sampling (hoisted out of the kernel) ---------------
    w1 = params["w1_mu"] + jnp.exp(params["w1_log_sigma"]) * params["eps_w1"]  # [N1,N0]
    b1 = params["b1_mu"] + jnp.exp(params["b1_log_sigma"]) * params["eps_b1"]  # [1,N1]
    w2 = params["w2_mu"] + jnp.exp(params["w2_log_sigma"]) * params["eps_w2"]  # [N2,N1]
    b2 = params["b2_mu"] + jnp.exp(params["b2_log_sigma"]) * params["eps_b2"]  # [1,N2]

    # Pack per layer: [in+1, out] with weight pre-transposed to [in, out], bias last row.
    s1 = jnp.concatenate([w1.T, b1], axis=0).astype(dot_dtype)                 # [N0+1, N1]
    s2 = jnp.concatenate([w2.T, b2], axis=0)                                   # [N1+1, N2]
    # Lane-dense output: pad only the SAMPLED fc2 stack to 128 columns (zeros -> the
    # padded outputs are sigmoid(0)=0.5 and get sliced off below).
    s2 = jnp.pad(s2, ((0, 0), (0, N2_PAD - N2))).astype(dot_dtype)             # [N1+1, 128]

    # --- Batch tiling ----------------------------------------------------------------
    # 8-row aligned, capped at 512 rows; sized so the grid has >= 2 steps whenever the
    # padded batch permits (so "parallel" shards across v7x's two TensorCores).
    b8 = _round_up(B, 8)
    tb = min(512, max(8, _round_up(pl.cdiv(b8, 2), 8)))
    b_pad = _round_up(b8, tb)
    if b_pad != B:
        x = jnp.pad(x, ((0, b_pad - B), (0, 0)))
    grid = (b_pad // tb,)

    out = pl.pallas_call(
        bayesian_nn_kernel,
        out_shape=jax.ShapeDtypeStruct((b_pad, N2_PAD), jnp.float32),
        grid_spec=pltpu.PrefetchScalarGridSpec(
            num_scalar_prefetch=0,
            grid=grid,
            in_specs=[
                pl.BlockSpec((tb, N0), lambda i: (i, 0)),     # x: streams per tile
                pl.BlockSpec(s1.shape, lambda i: (0, 0)),     # sampled params: resident
                pl.BlockSpec(s2.shape, lambda i: (0, 0)),
            ],
            out_specs=pl.BlockSpec((tb, N2_PAD), lambda i: (i, 0)),
        ),
        compiler_params=pltpu.CompilerParams(
            dimension_semantics=("parallel",)),
    )(x, s1, s2)
    return out[:B, :N2]


def he_init(n_in: int) -> float:
    return float(jnp.sqrt(2.0 / n_in))


def glorot(n_in: int, n_out: int) -> float:
    return float(jnp.sqrt(2.0 / (n_in + n_out)))


def make_params(key):
    """Deterministic synthetic parameters matching BayesLinear shapes (PyTorch layout)."""
    ks = jax.random.split(key, 8)
    prior_sigma1 = he_init(N0)        # fc1 prior_sigma (scale for init)
    prior_sigma2 = glorot(N1, N2)     # fc2 prior_sigma

    params = {
        # fc1: BayesLinear(in=N0, out=N1) -> weight [N1, N0], bias [1, N1]
        "w1_mu": prior_sigma1 * jax.random.normal(ks[0], (N1, N0), jnp.float32),
        "w1_log_sigma": jnp.full((N1, N0), jnp.log(0.1 * prior_sigma1), jnp.float32),
        "b1_mu": 0.01 * jax.random.normal(ks[1], (1, N1), jnp.float32),
        "b1_log_sigma": jnp.full((1, N1), jnp.log(0.1 * prior_sigma1), jnp.float32),
        # fc2: BayesLinear(in=N1, out=N2) -> weight [N2, N1], bias [1, N2]
        "w2_mu": prior_sigma2 * jax.random.normal(ks[2], (N2, N1), jnp.float32),
        "w2_log_sigma": jnp.full((N2, N1), jnp.log(0.1 * prior_sigma2), jnp.float32),
        "b2_mu": 0.01 * jax.random.normal(ks[3], (1, N2), jnp.float32),
        "b2_log_sigma": jnp.full((1, N2), jnp.log(0.1 * prior_sigma2), jnp.float32),
        # eps ~ N(0, 1), sampled once per forward (deterministic here)
        "eps_w1": jax.random.normal(ks[4], (N1, N0), jnp.float32),
        "eps_b1": jax.random.normal(ks[5], (1, N1), jnp.float32),
        "eps_w2": jax.random.normal(ks[6], (N2, N1), jnp.float32),
        "eps_b2": jax.random.normal(ks[7], (1, N2), jnp.float32),
    }
    return params


def reference_forward(x, p):
    """Pure-JAX reference for correctness check (PyTorch-layout params)."""
    w1 = p["w1_mu"] + jnp.exp(p["w1_log_sigma"]) * p["eps_w1"]
    b1 = p["b1_mu"] + jnp.exp(p["b1_log_sigma"]) * p["eps_b1"]
    w2 = p["w2_mu"] + jnp.exp(p["w2_log_sigma"]) * p["eps_w2"]
    b2 = p["b2_mu"] + jnp.exp(p["b2_log_sigma"]) * p["eps_b2"]
    h = jnp.maximum(x @ w1.T + b1, 0.0)
    return jax.nn.sigmoid(h @ w2.T + b2)


if __name__ == "__main__":
    key = jax.random.PRNGKey(0)
    k_x, k_p, k_x2 = jax.random.split(key, 3)

    params = make_params(k_p)

    # --- small batch (module-typical), both compute-dtype paths ----------------------
    x = jax.random.normal(k_x, (BATCH, N0), jnp.float32)
    ref = reference_forward(x, params)

    out_bf16 = jax.block_until_ready(bayesian_nn_forward(x, params, use_bf16=True))
    assert out_bf16.shape == (BATCH, N2)
    # bf16 MXU operands: accuracy loss far below Bayesian sampling noise.
    assert jnp.allclose(out_bf16, ref, atol=2e-2, rtol=2e-2), "bf16 path mismatch"

    out_f32 = jax.block_until_ready(bayesian_nn_forward(x, params, use_bf16=False))
    # Exact tanh-sigmoid epilogue (no approximate reciprocal) -> tight f32 agreement.
    assert jnp.allclose(out_f32, ref, atol=5e-3, rtol=5e-3), "f32 path mismatch"

    # --- larger ragged batch: exercises multi-tile grid + padding/slicing ------------
    xb = jax.random.normal(k_x2, (300, N0), jnp.float32)
    refb = reference_forward(xb, params)
    outb = jax.block_until_ready(bayesian_nn_forward(xb, params, use_bf16=True))
    assert outb.shape == (300, N2)
    assert jnp.allclose(outb, refb, atol=2e-2, rtol=2e-2), "multi-tile mismatch"

    print("KERNEL_OK")
</pallas_src>

<mosaic_0001>
module attributes {stable_mosaic.version = 11 : i64} {
  func.func @bayesian_nn_kernel(%arg0: i32, %arg1: memref<8x32xf32, #tpu.memory_space<vmem>>, %arg2: memref<33x64xbf16, #tpu.memory_space<vmem>>, %arg3: memref<65x128xbf16, #tpu.memory_space<vmem>>, %arg4: memref<8x128xf32, #tpu.memory_space<vmem>>) attributes {dimension_semantics = [#tpu.dimension_semantics<parallel>], iteration_bounds = array<i64: 1>, scalar_prefetch = 0 : i64, scratch_operands = 0 : i64, tpu.core_type = #tpu.core_type<tc>, window_params = [{transform_indices = @transform_0, window_bounds = array<i64: 8, 32>}, {pipeline_mode = #tpu.pipeline_mode<synchronous>, transform_indices = @transform_1, window_bounds = array<i64: 33, 64>}, {pipeline_mode = #tpu.pipeline_mode<synchronous>, transform_indices = @transform_2, window_bounds = array<i64: 65, 128>}, {transform_indices = @transform_3, window_bounds = array<i64: 8, 128>}]} {
    %c0 = arith.constant 0 : index
    %c0_0 = arith.constant 0 : index
    %0 = vector.load %arg1[%c0, %c0_0] : memref<8x32xf32, #tpu.memory_space<vmem>>, vector<8x32xf32>
    %1 = arith.truncf %0 : vector<8x32xf32> to vector<8x32xbf16>
    %c0_1 = arith.constant 0 : index
    %c0_2 = arith.constant 0 : index
    %2 = vector.load %arg2[%c0_1, %c0_2] : memref<33x64xbf16, #tpu.memory_space<vmem>>, vector<32x64xbf16>
    %cst = arith.constant dense<0.000000e+00> : vector<8x64xf32>
    %3 = tpu.matmul %1, %2, %cst {dimension_numbers = #tpu.dot_dimension_numbers<[1], [0], [0], [1], [0, 0, 1, 1], [], []>} : vector<8x32xbf16>, vector<32x64xbf16>, vector<8x64xf32> -> vector<8x64xf32>
    %c32 = arith.constant 32 : index
    %c0_3 = arith.constant 0 : index
    %4 = vector.load %arg2[%c32, %c0_3] : memref<33x64xbf16, #tpu.memory_space<vmem>>, vector<1x64xbf16>
    %5 = arith.extf %4 : vector<1x64xbf16> to vector<1x64xf32>
    %6 = vector.broadcast %5 : vector<1x64xf32> to vector<8x64xf32>
    %7 = arith.addf %3, %6 : vector<8x64xf32>
    %cst_4 = arith.constant 0.000000e+00 : f32
    %8 = vector.broadcast %cst_4 : f32 to vector<8x64xf32>
    %9 = arith.maximumf %7, %8 : vector<8x64xf32>
    %10 = arith.truncf %9 : vector<8x64xf32> to vector<8x64xbf16>
    %c0_5 = arith.constant 0 : index
    %c0_6 = arith.constant 0 : index
    %11 = vector.load %arg3[%c0_5, %c0_6] : memref<65x128xbf16, #tpu.memory_space<vmem>>, vector<64x128xbf16>
    %cst_7 = arith.constant dense<0.000000e+00> : vector<8x128xf32>
    %12 = tpu.matmul %10, %11, %cst_7 {dimension_numbers = #tpu.dot_dimension_numbers<[1], [0], [0], [1], [0, 0, 1, 1], [], []>} : vector<8x64xbf16>, vector<64x128xbf16>, vector<8x128xf32> -> vector<8x128xf32>
    %c64 = arith.constant 64 : index
    %c0_8 = arith.constant 0 : index
    %13 = vector.load %arg3[%c64, %c0_8] : memref<65x128xbf16, #tpu.memory_space<vmem>>, vector<1x128xbf16>
    %14 = arith.extf %13 : vector<1x128xbf16> to vector<1x128xf32>
    %15 = vector.broadcast %14 : vector<1x128xf32> to vector<8x128xf32>
    %16 = arith.addf %12, %15 : vector<8x128xf32>
    %cst_9 = arith.constant 5.000000e-01 : f32
    %17 = vector.broadcast %cst_9 : f32 to vector<8x128xf32>
    %18 = arith.mulf %17, %16 : vector<8x128xf32>
    %19 = math.tanh %18 : vector<8x128xf32>
    %cst_10 = arith.constant 5.000000e-01 : f32
    %20 = vector.broadcast %cst_10 : f32 to vector<8x128xf32>
    %21 = arith.mulf %20, %19 : vector<8x128xf32>
    %cst_11 = arith.constant 5.000000e-01 : f32
    %22 = vector.broadcast %cst_11 : f32 to vector<8x128xf32>
    %23 = arith.addf %22, %21 : vector<8x128xf32>
    %c0_12 = arith.constant 0 : index
    %c0_13 = arith.constant 0 : index
    %24 = vector.load %arg4[%c0_12, %c0_13] : memref<8x128xf32, #tpu.memory_space<vmem>>, vector<8x128xf32>
    tpu.vector_store %arg4[%c0_12, %c0_13], %23 {strides = array<i32>} : memref<8x128xf32, #tpu.memory_space<vmem>>, vector<8x128xf32>,
    return
  }
  func.func @transform_0(%arg0: i32) -> (i32, i32) {
    %c0_i32 = arith.constant 0 : i32
    %c0_i32_0 = arith.constant 0 : i32
    return %arg0, %c0_i32 : i32, i32
  }
  func.func @transform_1(%arg0: i32) -> (i32, i32) {
    %c0_i32 = arith.constant 0 : i32
    %c0_i32_0 = arith.constant 0 : i32
    %c0_i32_1 = arith.constant 0 : i32
    return %c0_i32, %c0_i32_0 : i32, i32
  }
  func.func @transform_2(%arg0: i32) -> (i32, i32) {
    %c0_i32 = arith.constant 0 : i32
    %c0_i32_0 = arith.constant 0 : i32
    %c0_i32_1 = arith.constant 0 : i32
    return %c0_i32, %c0_i32_0 : i32, i32
  }
  func.func @transform_3(%arg0: i32) -> (i32, i32) {
    %c0_i32 = arith.constant 0 : i32
    %c0_i32_0 = arith.constant 0 : i32
    return %arg0, %c0_i32 : i32, i32
  }
}

</mosaic_0001>

<llo_original>
// kernel: tpu_custom_call.1
$region0: #{tpu_custom_call.1}
  #allocation0 [shape = 'u32[]', space=smem, size = 0x4, offset = 0x4, fixed_abs, tag = 'smem constant byte address 0x4 - core index']
  #allocation1 [shape = 'u32[144,128]{1,0:T(1,128)}', space=vmem, size = 0x12000, scoped, tag = 'internal scratch']
  %s0 = inlined_call_operand.hbm [shape: f32[8,32], index: 0, kind: input, shape index: {}]
  %s1 = inlined_call_operand.hbm [shape: bf16[33,64], index: 1, kind: input, shape index: {}]
  %s2 = inlined_call_operand.hbm [shape: bf16[65,128], index: 2, kind: input, shape index: {}]
  %s3 = inlined_call_operand.hbm [shape: f32[8,128], index: 3, kind: output, shape index: {}]
  %s4 = sld [smem:[#allocation0]]
  $region34: #{tpu_custom_call.1} parent=0
    _
  %s6 = ssub.s32 1, %s4
  %s7 = scalar_select 0, %s6, %s4
  $region1: #{tpu_custom_call.1} parent=0
    #allocation2 [shape = 'u8[4096]{0}', space=vmem, size = 0x1000, scoped, tag = 'input window, operand 0, single buffered']
    #allocation3 [shape = 's32[1]{0}', space=sflag, size = 0x4, scoped, tag = 'scoped memory for tpu_custom_call.1']
    #allocation4 [shape = 's32[1]{0}', space=sflag, size = 0x4, scoped, tag = 'scoped memory for tpu_custom_call.1']
    #allocation5 [shape = 'u8[10240]{0}', space=vmem, size = 0x2800, scoped, tag = 'input window, operand 1, single buffered']
    #allocation6 [shape = 's32[1]{0}', space=sflag, size = 0x4, scoped, tag = 'scoped memory for tpu_custom_call.1']
    #allocation7 [shape = 'u8[18432]{0}', space=vmem, size = 0x4800, scoped, tag = 'input window, operand 2, single buffered']
    #allocation8 [shape = 'u8[4096]{0}', space=vmem, size = 0x1000, scoped, tag = 'output window, operand 0, single buffered']
    %8 = vsyncpa [#allocation3], 0
    %9 = vsyncpa [#allocation6], 0
    %10 = vsyncpa [#allocation4], 0
    // Predicated region
    $region2: #{tpu_custom_call.1} parent=1 // pred_check
      _
    $region3: #{tpu_custom_call.1} parent=1 // pred_check_branch
      %12 = sbr.rel (0) target = $region5
    $region4: #{tpu_custom_call.1} parent=1 // pred_region
      %s14 = ssub.s32 128, 128
      %15 = vsyncadd [#allocation3], %s14
      %s17 = sshll.u32 [#allocation2], 4
      %s18 = int_to_ptr.vmem [resolvable:$true] %s17
      %20 = dma.hbm_to_vmem [thread:$0]  %s0, 128, %s18, [#allocation3]
    $region5: #{tpu_custom_call.1} parent=1 // pred_fallthru
      _
    // Predicated region
    $region6: #{tpu_custom_call.1} parent=1 // pred_check
      _
    $region7: #{tpu_custom_call.1} parent=1 // pred_check_branch
      %22 = sbr.rel (0) target = $region9
    $region8: #{tpu_custom_call.1} parent=1 // pred_region
      %s24 = ssub.s32 320, 320
      %25 = vsyncadd [#allocation6], %s24
      %s26 = sshll.u32 [#allocation5], 4
      %s27 = int_to_ptr.vmem [resolvable:$true] %s26
      %32 = dma.hbm_to_vmem [thread:$0]  %s1, 320, %s27, [#allocation6], 64, 64, 4
    $region9: #{tpu_custom_call.1} parent=1 // pred_fallthru
      _
    // Predicated region
    $region10: #{tpu_custom_call.1} parent=1 // pred_check
      _
    $region11: #{tpu_custom_call.1} parent=1 // pred_check_branch
      %34 = sbr.rel (0) target = $region13
    $region12: #{tpu_custom_call.1} parent=1 // pred_region
      %s36 = ssub.s32 576, 576
      %37 = vsyncadd [#allocation6], %s36
      %s38 = sshll.u32 [#allocation7], 4
      %s39 = int_to_ptr.vmem [resolvable:$true] %s38
      %44 = dma.hbm_to_vmem [thread:$0]  %s2, 576, %s39, [#allocation6], 64, 64, 4
    $region13: #{tpu_custom_call.1} parent=1 // pred_fallthru
      _
    // Predicated region
    $region14: #{tpu_custom_call.1} parent=1 // pred_check
      _
    $region15: #{tpu_custom_call.1} parent=1 // pred_check_branch
      %46 = sbr.rel (0) target = $region17
    $region16: #{tpu_custom_call.1} parent=1 // pred_region
      %47 = dma.done [#allocation3], 128
    $region17: #{tpu_custom_call.1} parent=1 // pred_fallthru
      _
    // Predicated region
    $region18: #{tpu_custom_call.1} parent=1 // pred_check
      _
    $region19: #{tpu_custom_call.1} parent=1 // pred_check_branch
      %49 = sbr.rel (0) target = $region21
    $region20: #{tpu_custom_call.1} parent=1 // pred_region
      %50 = dma.done [#allocation6], 320
    $region21: #{tpu_custom_call.1} parent=1 // pred_fallthru
      _
    // Predicated region
    $region22: #{tpu_custom_call.1} parent=1 // pred_check
      _
    $region23: #{tpu_custom_call.1} parent=1 // pred_check_branch
      %52 = sbr.rel (0) target = $region25
    $region24: #{tpu_custom_call.1} parent=1 // pred_region
      %53 = dma.done [#allocation6], 576
    $region25: #{tpu_custom_call.1} parent=1 // pred_fallthru
      _
    %v55 = vld [vmem:[#allocation2] sm:$0xff]
    %v56 = vpack.c.bf16 %v55, %v55
    %v57 = vld [vmem:[#allocation5] sm:$0xf]
    %v58 = vld [vmem:[#allocation5 + $0x4] sm:$0xf]
    %v59 = vld [vmem:[#allocation5 + $0x8] sm:$0xf]
    %v60 = vld [vmem:[#allocation5 + $0xc] sm:$0xf]
    %v61 = vld [vmem:[#allocation5 + $0x10] sm:$0x1]
    %v62 = vunpack.c.l.bf16 %v61
    %v63 = vlaneseq
    %v64 = vshrl.u32 %v63, 7
    %v65 = vsub.s32 0, %v64
    %v66 = vrot.slane %v62, %v65
    %v71 = vunpack.c.l.b16 %v57
    %v72 = vunpack.c.l.b16 %v58
    %v73 = vunpack.c.l.b16 %v59
    %v74 = vunpack.c.l.b16 %v60
    %v75 = vpack.c.b16 %v72, %v71
    %v76 = vpack.c.b16 %v74, %v73
    %vm79 = vcmask 261120
    %v81 = vsel %vm79, %v56, 0
    %83 = vmatprep.subr.bf16.mxu0 0
    %84 = vmatpush1.bf16.msra.mxu0 %v75
    %85 = vmatprep.subr.bf16.mxu0 0
    %86 = vmatpush1.bf16.msra.mxu0 %v76
    %87 = vmatprep.subr.bf16.mxu0 0
    %88 = vmatpush1.bf16.msra.mxu0 0
    %89 = vmatprep.subr.bf16.mxu0 0
    %90 = vmatpush1.bf16.msra.mxu0 0
    %91 = vmatprep.subr.bf16.mxu0 0
    %92 = vmatpush1.bf16.msra.mxu0 0
    %93 = vmatprep.subr.bf16.mxu0 0
    %94 = vmatpush1.bf16.msra.mxu0 0
    %95 = vmatprep.subr.bf16.mxu0 0
    %96 = vmatpush1.bf16.msra.mxu0 0
    %97 = vmatprep.subr.bf16.mxu0 0
    %98 = vmatpush1.bf16.msra.mxu0 0
    %99 = vmatprep.subr.bf16.mxu0 0
    %100 = vmatpush1.bf16.msra.mxu0 0
    %101 = vmatprep.subr.bf16.mxu0 0
    %102 = vmatpush1.bf16.msra.mxu0 0
    %103 = vmatprep.subr.bf16.mxu0 0
    %104 = vmatpush1.bf16.msra.mxu0 0
    %105 = vmatprep.subr.bf16.mxu0 0
    %106 = vmatpush1.bf16.msra.mxu0 0
    %107 = vmatprep.subr.bf16.mxu0 0
    %108 = vmatpush1.bf16.msra.mxu0 0
    %109 = vmatprep.subr.bf16.mxu0 0
    %110 = vmatpush1.bf16.msra.mxu0 0
    %111 = vmatprep.subr.bf16.mxu0 0
    %112 = vmatpush1.bf16.msra.mxu0 0
    %113 = vmatprep.subr.bf16.mxu0 0
    %114 = vmatpush1.bf16.msra.mxu0 0
    %115 = vmatprep.mubr.bf16.mxu0 0
    %116 = vmatmul.mubr.bf16.gmra.mrb[0].mxu0 %v81
    %v117 = vpop.f32.mrb[0].mxu0
    %v118 = vadd.f32 %v66, %v117
    %v119 = vpop.f32.mrb[0].mxu0
    %v120 = vpop.f32.mrb[0].mxu0
    %v121 = vpop.f32.mrb[0].mxu0
    %122 = vdwg.mxu0
    %v123 = vmax.f32 %v118, 0.0
    %v124 = vpack.c.bf16 %v123, %v123
    %v125 = vld [vmem:[#allocation7] sm:$0xf]
    %v126 = vld [vmem:[#allocation7 + $0x4] sm:$0xf]
    %v127 = vld [vmem:[#allocation7 + $0x8] sm:$0xf]
    %v128 = vld [vmem:[#allocation7 + $0xc] sm:$0xf]
    %v129 = vld [vmem:[#allocation7 + $0x10] sm:$0xf]
    %v130 = vld [vmem:[#allocation7 + $0x14] sm:$0xf]
    %v131 = vld [vmem:[#allocation7 + $0x18] sm:$0xf]
    %v132 = vld [vmem:[#allocation7 + $0x1c] sm:$0xf]
    %v133 = vld [vmem:[#allocation7 + $0x20] sm:$0x1]
    %v134 = vunpack.c.l.bf16 %v133
    %v135 = vlaneseq
    %v136 = vshrl.u32 %v135, 7
    %v137 = vsub.s32 0, %v136
    %v138 = vrot.slane %v134, %v137
    %v147 = vunpack.c.l.b16 %v125
    %v148 = vunpack.c.l.b16 %v126
    %v149 = vunpack.c.l.b16 %v127
    %v150 = vunpack.c.l.b16 %v128
    %v151 = vunpack.c.l.b16 %v129
    %v152 = vunpack.c.l.b16 %v130
    %v153 = vunpack.c.l.b16 %v131
    %v154 = vunpack.c.l.b16 %v132
    %v155 = vpack.c.b16 %v148, %v147
    %v156 = vpack.c.b16 %v150, %v149
    %v157 = vpack.c.b16 %v152, %v151
    %v158 = vpack.c.b16 %v154, %v153
    %vm163 = vcmask 523264
    %v165 = vsel %vm163, %v124, 0
    %167 = vmatprep.subr.bf16.mxu0 0
    %168 = vmatpush1.bf16.msra.mxu0 %v155
    %169 = vmatprep.subr.bf16.mxu0 0
    %170 = vmatpush1.bf16.msra.mxu0 %v156
    %171 = vmatprep.subr.bf16.mxu0 0
    %172 = vmatpush1.bf16.msra.mxu0 %v157
    %173 = vmatprep.subr.bf16.mxu0 0
    %174 = vmatpush1.bf16.msra.mxu0 %v158
    %175 = vmatprep.subr.bf16.mxu0 0
    %176 = vmatpush1.bf16.msra.mxu0 0
    %177 = vmatprep.subr.bf16.mxu0 0
    %178 = vmatpush1.bf16.msra.mxu0 0
    %179 = vmatprep.subr.bf16.mxu0 0
    %180 = vmatpush1.bf16.msra.mxu0 0
    %181 = vmatprep.subr.bf16.mxu0 0
    %182 = vmatpush1.bf16.msra.mxu0 0
    %183 = vmatprep.subr.bf16.mxu0 0
    %184 = vmatpush1.bf16.msra.mxu0 0
    %185 = vmatprep.subr.bf16.mxu0 0
    %186 = vmatpush1.bf16.msra.mxu0 0
    %187 = vmatprep.subr.bf16.mxu0 0
    %188 = vmatpush1.bf16.msra.mxu0 0
    %189 = vmatprep.subr.bf16.mxu0 0
    %190 = vmatpush1.bf16.msra.mxu0 0
    %191 = vmatprep.subr.bf16.mxu0 0
    %192 = vmatpush1.bf16.msra.mxu0 0
    %193 = vmatprep.subr.bf16.mxu0 0
    %194 = vmatpush1.bf16.msra.mxu0 0
    %195 = vmatprep.subr.bf16.mxu0 0
    %196 = vmatpush1.bf16.msra.mxu0 0
    %197 = vmatprep.subr.bf16.mxu0 0
    %198 = vmatpush1.bf16.msra.mxu0 0
    %199 = vmatprep.mubr.bf16.mxu0 0
    %200 = vmatmul.mubr.bf16.gmra.mrb[0].mxu0 %v165
    %v201 = vpop.f32.mrb[0].mxu0
    %v202 = vadd.f32 %v138, %v201
    %v203 = vpop.f32.mrb[0].mxu0
    %v204 = vpop.f32.mrb[0].mxu0
    %v205 = vpop.f32.mrb[0].mxu0
    %206 = vdwg.mxu0
    %v207 = vmul.f32 %v202, 0.5
    %v208 = vtanh.pop %v207
    %v209 = vmul.f32 %v208, 0.5
    %v210 = vadd.f32 %v209, 0.5
    %211 = vst [vmem:[#allocation8] sm:$0xff] %v210
    // Predicated region
    $region26: #{tpu_custom_call.1} parent=1 // pred_check
      _
    $region27: #{tpu_custom_call.1} parent=1 // pred_check_branch
      %213 = sbr.rel (0) target = $region29
    $region28: #{tpu_custom_call.1} parent=1 // pred_region
      %s215 = ssub.s32 128, 128
      %216 = vsyncadd [#allocation4], %s215
      %s218 = sshll.u32 [#allocation8], 4
      %s219 = int_to_ptr.vmem [resolvable:$true] %s218
      %221 = dma.vmem_to_hbm [thread:$0]  %s219, 128, %s3, [#allocation4]
    $region29: #{tpu_custom_call.1} parent=1 // pred_fallthru
      _
    // Predicated region
    $region30: #{tpu_custom_call.1} parent=1 // pred_check
      _
    $region31: #{tpu_custom_call.1} parent=1 // pred_check_branch
      %223 = sbr.rel (0) target = $region33
    $region32: #{tpu_custom_call.1} parent=1 // pred_region
      %224 = dma.done [#allocation4], 128
    $region33: #{tpu_custom_call.1} parent=1 // pred_fallthru
      _
    %225 = vsyncpa [#allocation3], 1
    %226 = vsyncpa [#allocation6], 1
    %227 = vsyncpa [#allocation4], 1

</llo_original>
